<compile_context>
chip_gen: v6e
topology: v6e:2x2x1
jax: 0.10.0
libtpu: 0.0.40
codegen_flags: <defaults>
</compile_context>

<pallas_src>
import jax
import jax.numpy as jnp
from jax import lax
from jax.experimental import pallas as pl
from jax.experimental.pallas import tpu as pltpu


def _tpu_query():
    vmem_cap = 64 << 20    # conservative default (v7x per-TC VMEM)
    num_cores = 1
    try:
        info = pltpu.get_tpu_info()
        vmem_cap = int(getattr(info, "vmem_capacity_bytes", vmem_cap))
        for name in ("num_cores", "core_count", "num_tensorcores", "tensorcores_per_chip"):
            v = getattr(info, name, None)
            if v is not None:
                num_cores = max(1, int(v))
                break
    except Exception:
        pass
    return vmem_cap, num_cores


def _choose_plane_shape(N, D):
    """Flatten the contiguous (N, D) plane to (rows, W) with W a multiple of 128 when useful."""
    total = N * D
    if D % 128 == 0 and D >= 512:
        return N, D
    for W in (2048, 1024, 512, 256, 128):
        if W > total or total % W:
            continue
        if D % 128 != 0 or W > D:
            return total // W, W
    return N, D   # no lane-friendly factorization; full-extent last dim is still legal


def _choose_row_tile(n_rows, target_rows, multi_core):
    """Pick a row tile (multiple of 8, or full extent), preferring exact divisors of n_rows."""
    target_rows = max(8, min(target_rows, n_rows))
    if target_rows >= n_rows:
        if multi_core and n_rows >= 16:
            # split roughly 50/50 across the two TensorCores
            half = ((-(-n_rows // 2)) + 7) // 8 * 8
            if half < n_rows:
                return half
        return n_rows
    tile = max(8, (target_rows // 8) * 8)
    # Prefer a multiple-of-8 divisor near the target (no remainder tile -> no tail handling).
    lower = max(8, ((tile // 2 + 7) // 8) * 8)
    t = tile
    while t >= lower:
        if n_rows % t == 0:
            tile = t
            break
        t -= 8
    # Nudge toward an even tile count so 2 TensorCores get balanced work.
    if multi_core:
        nt = -(-n_rows // tile)
        if nt > 1 and nt % 2 == 1:
            for t in range(tile - 8, max(7, tile // 2 - 1), -8):
                if (-(-n_rows // t)) % 2 == 0:
                    tile = t
                    break
    return tile


def _make_kernel(bound_pairs, total_rows, row_tile):
    num_pairs = len(bound_pairs)
    needs_tail = (total_rows % row_tile) != 0

    def kernel(x_ref, d_ref, out_ref):
        # x_ref:   (num_pairs+1, row_tile, W) -- only the levels actually used
        # d_ref:   (row_tile, W)
        # out_ref: (1, 1, 128) lane-packed partials: lane i = sq-sum(pair i), lane P+i = count
        d = d_ref[...]

        if needs_tail:
            # Poison out-of-range tail rows once per tile; NaN fails both compares below, so
            # those rows contribute to neither the squared sums nor the counts.
            r = pl.program_id(0)
            row_ids = lax.broadcasted_iota(jnp.int32, (row_tile, 1), 0) + r * row_tile
            d = jnp.where(row_ids < total_rows, d, jnp.nan)

        lane = lax.broadcasted_iota(jnp.int32, (1, 1, 128), 2)
        packed = jnp.zeros((1, 1, 128), jnp.float32)

        for i in range(num_pairs):             # static unroll; num_pairs is tiny
            lo, hi = bound_pairs[i]            # baked-in Python float constants
            mask = (d < lo) | (d > hi)
            diff = x_ref[i] - x_ref[i + 1]     # native dtype (bf16 stays bf16 on the VALU)
            diff32 = diff.astype(jnp.float32)  # widen only at the square/accumulate
            sq = jnp.where(mask, diff32 * diff32, jnp.float32(0.0))
            s = jnp.sum(sq)
            c = jnp.sum(mask.astype(jnp.float32))
            packed = jnp.where(lane == i, s, packed)
            packed = jnp.where(lane == num_pairs + i, c, packed)

        out_ref[...] = packed

    return kernel


def consistency_loss(inp, dist, bounds, *, row_tile=None):
    """inp: (L, N, D), dist: (N, D), bounds: list of (lo, hi). Returns scalar f32 loss."""
    L, N, D = inp.shape
    num_pairs = len(bounds) - 1
    if num_pairs <= 0:
        return jnp.float32(0.0)
    assert L >= num_pairs + 1, "need at least len(bounds) prediction levels"
    assert dist.shape == (N, D)
    assert 2 * num_pairs <= 128, "lane-packed partials require len(bounds)-1 <= 64"

    bound_pairs = tuple((float(lo), float(hi)) for (lo, hi) in bounds[:num_pairs])
    levels = num_pairs + 1

    # Lane-dense layout: free contiguous reshape of the (N, D) plane.
    NR, W = _choose_plane_shape(N, D)
    inp_r = inp.reshape(L, NR, W)
    dist_r = dist.reshape(NR, W)

    vmem_cap, num_cores = _tpu_query()
    multi_core = num_cores > 1
    x_item = inp.dtype.itemsize
    d_item = dist.dtype.itemsize

    if row_tile is None:
        # Cap each double-buffered input slab (used levels + dist for one tile) at ~10 MiB so
        # two buffers plus elementwise temporaries fit comfortably in v7x's 64 MiB per-TC VMEM.
        slab_cap = 10 << 20
        per_row_bytes = (levels * x_item + d_item) * W
        target_rows = max(8, slab_cap // max(per_row_bytes, 1))
        row_tile = _choose_row_tile(NR, target_rows, multi_core)
    else:
        row_tile = min(max(int(row_tile), 1), NR)
        if row_tile < NR:
            assert row_tile % 8 == 0, "row_tile must be a multiple of 8 (or >= row count)"

    num_row_tiles = pl.cdiv(NR, row_tile)

    # Input slabs are double-buffered; add headroom for mask/diff/square temporaries + scratch.
    slab_bytes = (levels * x_item + d_item) * row_tile * W
    temp_bytes = 3 * row_tile * W * 4
    vmem_limit = int(min(vmem_cap, max(2 * slab_bytes + temp_bytes + (4 << 20), 16 << 20)))

    cost = pl.CostEstimate(
        flops=9 * num_pairs * NR * W,
        transcendentals=0,
        bytes_accessed=(levels * x_item + d_item) * NR * W + num_row_tiles * 128 * 4,
    )

    grid_spec = pltpu.PrefetchScalarGridSpec(
        num_scalar_prefetch=0,
        grid=(num_row_tiles,),
        in_specs=[
            # Leading block dim = levels with block index pinned to 0: trailing unused levels
            # of the (L, ...) input are never DMA'd.
            pl.BlockSpec((levels, row_tile, W), lambda r: (0, r, 0)),
            pl.BlockSpec((row_tile, W), lambda r: (r, 0)),
        ],
        out_specs=pl.BlockSpec((1, 1, 128), lambda r: (r, 0, 0)),   # lane-packed partials
    )

    out = pl.pallas_call(
        _make_kernel(bound_pairs, NR, row_tile),
        out_shape=jax.ShapeDtypeStruct((num_row_tiles, 1, 128), jnp.float32),
        grid_spec=grid_spec,
        compiler_params=pltpu.CompilerParams(
            dimension_semantics=("parallel",),
            vmem_limit_bytes=vmem_limit,
        ),
        cost_estimate=cost,
    )(inp_r, dist_r)

    # Finalize (tiny): sum partials across row tiles per pair, then mean-over-mask per pair.
    packed = out[:, 0, :]                                    # (num_row_tiles, 128)
    sums = jnp.sum(packed[:, :num_pairs], axis=0)            # (P,)
    cnts = jnp.sum(packed[:, num_pairs:2 * num_pairs], axis=0)
    terms = jnp.where(cnts > 0.0, sums / jnp.maximum(cnts, 1.0), 0.0)
    return jnp.sum(terms)


def consistency_loss_ref(inp, dist, bounds):
    """Pure-JAX reference of the PyTorch forward."""
    loss = jnp.float32(0.0)
    for i in range(len(bounds) - 1):
        lo, hi = bounds[i]
        mask = (dist < lo) | (dist > hi)
        cnt = jnp.sum(mask.astype(jnp.float32))
        diff = (inp[i] - inp[i + 1]).astype(jnp.float32)
        sq = jnp.sum(jnp.where(mask, diff * diff, 0.0))
        loss = loss + jnp.where(cnt > 0, sq / jnp.maximum(cnt, 1.0), 0.0)
    return loss


if __name__ == "__main__":
    bounds = [(0.3, 0.8), (0.6, 1.2), (1.0, 1.5)]   # 3 bounds -> 2 consecutive pairs

    key = jax.random.PRNGKey(0)
    k1, k2, k3, k4, k5, k6 = jax.random.split(key, 6)

    # Case 1: extra unused trailing level (L > len(bounds)); auto tiling; lane-dense reshape.
    L1, N1, D1 = 4, 64, 256
    inp1 = jax.random.normal(k1, (L1, N1, D1), dtype=jnp.float32)
    dist1 = jax.random.uniform(k2, (N1, D1), dtype=jnp.float32, minval=0.0, maxval=1.5)
    loss1 = jax.block_until_ready(consistency_loss(inp1, dist1, bounds))
    ref1 = jax.block_until_ready(consistency_loss_ref(inp1, dist1, bounds))
    assert jnp.allclose(loss1, ref1, rtol=1e-4, atol=1e-5), (loss1, ref1)

    # Case 2: explicit small row tile with a remainder tile (exercises the NaN-poison tail).
    L2, N2, D2 = 3, 40, 96      # flattens to a (15, 256) plane; row_tile=8 -> 7-row tail
    inp2 = jax.random.normal(k3, (L2, N2, D2), dtype=jnp.float32)
    dist2 = jax.random.uniform(k4, (N2, D2), dtype=jnp.float32, minval=0.0, maxval=1.5)
    loss2 = jax.block_until_ready(consistency_loss(inp2, dist2, bounds, row_tile=8))
    ref2 = jax.block_until_ready(consistency_loss_ref(inp2, dist2, bounds))
    assert jnp.allclose(loss2, ref2, rtol=1e-4, atol=1e-5), (loss2, ref2)

    # Case 3: bf16 predictions (bf16 subtract on the VALU, f32 square/accumulate).
    L3, N3, D3 = 3, 32, 128
    inp3 = jax.random.normal(k5, (L3, N3, D3), dtype=jnp.bfloat16)
    dist3 = jax.random.uniform(k6, (N3, D3), dtype=jnp.float32, minval=0.0, maxval=1.5)
    loss3 = jax.block_until_ready(consistency_loss(inp3, dist3, bounds))
    ref3 = jax.block_until_ready(consistency_loss_ref(inp3, dist3, bounds))
    assert jnp.allclose(loss3, ref3, rtol=1e-2, atol=1e-3), (loss3, ref3)

    print("KERNEL_OK")
</pallas_src>

<mosaic_0001>
module attributes {stable_mosaic.version = 11 : i64} {
  func.func @kernel(%arg0: i32, %arg1: memref<3x8x2048xf32, #tpu.memory_space<vmem>>, %arg2: memref<8x2048xf32, #tpu.memory_space<vmem>>, %arg3: memref<1x1x128xf32, #tpu.memory_space<vmem>>) attributes {dimension_semantics = [#tpu.dimension_semantics<parallel>], iteration_bounds = array<i64: 1>, scalar_prefetch = 0 : i64, scratch_operands = 0 : i64, tpu.core_type = #tpu.core_type<tc>, window_params = [{transform_indices = @transform_0, window_bounds = array<i64: 3, 8, 2048>}, {transform_indices = @transform_1, window_bounds = array<i64: 8, 2048>}, {transform_indices = @transform_2, window_bounds = array<i64: 1, 1, 128>}]} {
    %c0 = arith.constant 0 : index
    %c0_0 = arith.constant 0 : index
    %0 = vector.load %arg2[%c0, %c0_0] : memref<8x2048xf32, #tpu.memory_space<vmem>>, vector<8x2048xf32>
    %1 = tpu.iota {dimensions = array<i32: 2>} : vector<1x1x128xi32>
    %cst = arith.constant 0.000000e+00 : f32
    %2 = vector.broadcast %cst : f32 to vector<1x1x128xf32>
    %cst_1 = arith.constant 3.000000e-01 : f32
    %3 = vector.broadcast %cst_1 : f32 to vector<8x2048xf32>
    %4 = arith.cmpf olt, %0, %3 : vector<8x2048xf32>
    %cst_2 = arith.constant 8.000000e-01 : f32
    %5 = vector.broadcast %cst_2 : f32 to vector<8x2048xf32>
    %6 = arith.cmpf ogt, %0, %5 : vector<8x2048xf32>
    %7 = arith.ori %4, %6 : vector<8x2048xi1>
    %c0_3 = arith.constant 0 : index
    %c0_4 = arith.constant 0 : index
    %c0_5 = arith.constant 0 : index
    %8 = vector.load %arg1[%c0_3, %c0_4, %c0_5] : memref<3x8x2048xf32, #tpu.memory_space<vmem>>, vector<1x8x2048xf32>
    %9 = vector.shape_cast %8 : vector<1x8x2048xf32> to vector<8x2048xf32>
    %c1 = arith.constant 1 : index
    %c0_6 = arith.constant 0 : index
    %c0_7 = arith.constant 0 : index
    %10 = vector.load %arg1[%c1, %c0_6, %c0_7] : memref<3x8x2048xf32, #tpu.memory_space<vmem>>, vector<1x8x2048xf32>
    %11 = vector.shape_cast %10 : vector<1x8x2048xf32> to vector<8x2048xf32>
    %12 = arith.subf %9, %11 : vector<8x2048xf32>
    %13 = arith.mulf %12, %12 : vector<8x2048xf32>
    %cst_8 = arith.constant 0.000000e+00 : f32
    %14 = vector.broadcast %cst_8 : f32 to vector<8x2048xf32>
    %15 = arith.select %7, %13, %14 : vector<8x2048xi1>, vector<8x2048xf32>
    %16 = vector.shape_cast %15 : vector<8x2048xf32> to vector<1x8x2048xf32>
    %cst_9 = arith.constant dense<0.000000e+00> : vector<1xf32>
    %17 = vector.multi_reduction <add>, %16, %cst_9 [1, 2] : vector<1x8x2048xf32> to vector<1xf32>
    %18 = vector.shape_cast %17 : vector<1xf32> to vector<1x1x1xf32>
    %19 = vector.extract %18[0, 0, 0] : f32 from vector<1x1x1xf32>
    %20 = arith.extui %7 : vector<8x2048xi1> to vector<8x2048xi32>
    %21 = arith.sitofp %20 : vector<8x2048xi32> to vector<8x2048xf32>
    %22 = vector.shape_cast %21 : vector<8x2048xf32> to vector<1x8x2048xf32>
    %cst_10 = arith.constant dense<0.000000e+00> : vector<1xf32>
    %23 = vector.multi_reduction <add>, %22, %cst_10 [1, 2] : vector<1x8x2048xf32> to vector<1xf32>
    %24 = vector.shape_cast %23 : vector<1xf32> to vector<1x1x1xf32>
    %25 = vector.extract %24[0, 0, 0] : f32 from vector<1x1x1xf32>
    %c0_i32 = arith.constant 0 : i32
    %26 = vector.broadcast %c0_i32 : i32 to vector<1x1x128xi32>
    %27 = arith.cmpi eq, %1, %26 : vector<1x1x128xi32>
    %28 = vector.broadcast %19 : f32 to vector<1x1x128xf32>
    %29 = arith.select %27, %28, %2 : vector<1x1x128xi1>, vector<1x1x128xf32>
    %c2_i32 = arith.constant 2 : i32
    %30 = vector.broadcast %c2_i32 : i32 to vector<1x1x128xi32>
    %31 = arith.cmpi eq, %1, %30 : vector<1x1x128xi32>
    %32 = vector.broadcast %25 : f32 to vector<1x1x128xf32>
    %33 = arith.select %31, %32, %29 : vector<1x1x128xi1>, vector<1x1x128xf32>
    %cst_11 = arith.constant 6.000000e-01 : f32
    %34 = vector.broadcast %cst_11 : f32 to vector<8x2048xf32>
    %35 = arith.cmpf olt, %0, %34 : vector<8x2048xf32>
    %cst_12 = arith.constant 1.200000e+00 : f32
    %36 = vector.broadcast %cst_12 : f32 to vector<8x2048xf32>
    %37 = arith.cmpf ogt, %0, %36 : vector<8x2048xf32>
    %38 = arith.ori %35, %37 : vector<8x2048xi1>
    %c1_13 = arith.constant 1 : index
    %c0_14 = arith.constant 0 : index
    %c0_15 = arith.constant 0 : index
    %39 = vector.load %arg1[%c1_13, %c0_14, %c0_15] : memref<3x8x2048xf32, #tpu.memory_space<vmem>>, vector<1x8x2048xf32>
    %40 = vector.shape_cast %39 : vector<1x8x2048xf32> to vector<8x2048xf32>
    %c2 = arith.constant 2 : index
    %c0_16 = arith.constant 0 : index
    %c0_17 = arith.constant 0 : index
    %41 = vector.load %arg1[%c2, %c0_16, %c0_17] : memref<3x8x2048xf32, #tpu.memory_space<vmem>>, vector<1x8x2048xf32>
    %42 = vector.shape_cast %41 : vector<1x8x2048xf32> to vector<8x2048xf32>
    %43 = arith.subf %40, %42 : vector<8x2048xf32>
    %44 = arith.mulf %43, %43 : vector<8x2048xf32>
    %cst_18 = arith.constant 0.000000e+00 : f32
    %45 = vector.broadcast %cst_18 : f32 to vector<8x2048xf32>
    %46 = arith.select %38, %44, %45 : vector<8x2048xi1>, vector<8x2048xf32>
    %47 = vector.shape_cast %46 : vector<8x2048xf32> to vector<1x8x2048xf32>
    %cst_19 = arith.constant dense<0.000000e+00> : vector<1xf32>
    %48 = vector.multi_reduction <add>, %47, %cst_19 [1, 2] : vector<1x8x2048xf32> to vector<1xf32>
    %49 = vector.shape_cast %48 : vector<1xf32> to vector<1x1x1xf32>
    %50 = vector.extract %49[0, 0, 0] : f32 from vector<1x1x1xf32>
    %51 = arith.extui %38 : vector<8x2048xi1> to vector<8x2048xi32>
    %52 = arith.sitofp %51 : vector<8x2048xi32> to vector<8x2048xf32>
    %53 = vector.shape_cast %52 : vector<8x2048xf32> to vector<1x8x2048xf32>
    %cst_20 = arith.constant dense<0.000000e+00> : vector<1xf32>
    %54 = vector.multi_reduction <add>, %53, %cst_20 [1, 2] : vector<1x8x2048xf32> to vector<1xf32>
    %55 = vector.shape_cast %54 : vector<1xf32> to vector<1x1x1xf32>
    %56 = vector.extract %55[0, 0, 0] : f32 from vector<1x1x1xf32>
    %c1_i32 = arith.constant 1 : i32
    %57 = vector.broadcast %c1_i32 : i32 to vector<1x1x128xi32>
    %58 = arith.cmpi eq, %1, %57 : vector<1x1x128xi32>
    %59 = vector.broadcast %50 : f32 to vector<1x1x128xf32>
    %60 = arith.select %58, %59, %33 : vector<1x1x128xi1>, vector<1x1x128xf32>
    %c3_i32 = arith.constant 3 : i32
    %61 = vector.broadcast %c3_i32 : i32 to vector<1x1x128xi32>
    %62 = arith.cmpi eq, %1, %61 : vector<1x1x128xi32>
    %63 = vector.broadcast %56 : f32 to vector<1x1x128xf32>
    %64 = arith.select %62, %63, %60 : vector<1x1x128xi1>, vector<1x1x128xf32>
    %c0_21 = arith.constant 0 : index
    %c0_22 = arith.constant 0 : index
    %c0_23 = arith.constant 0 : index
    %65 = vector.load %arg3[%c0_21, %c0_22, %c0_23] : memref<1x1x128xf32, #tpu.memory_space<vmem>>, vector<1x1x128xf32>
    tpu.vector_store %arg3[%c0_21, %c0_22, %c0_23], %64 {strides = array<i32>} : memref<1x1x128xf32, #tpu.memory_space<vmem>>, vector<1x1x128xf32>,
    return
  }
  func.func @transform_0(%arg0: i32) -> (i32, i32, i32) {
    %c0_i32 = arith.constant 0 : i32
    %c0_i32_0 = arith.constant 0 : i32
    %c0_i32_1 = arith.constant 0 : i32
    return %c0_i32, %arg0, %c0_i32_0 : i32, i32, i32
  }
  func.func @transform_1(%arg0: i32) -> (i32, i32) {
    %c0_i32 = arith.constant 0 : i32
    %c0_i32_0 = arith.constant 0 : i32
    return %arg0, %c0_i32 : i32, i32
  }
  func.func @transform_2(%arg0: i32) -> (i32, i32, i32) {
    %c0_i32 = arith.constant 0 : i32
    %c0_i32_0 = arith.constant 0 : i32
    %c0_i32_1 = arith.constant 0 : i32
    return %arg0, %c0_i32, %c0_i32_0 : i32, i32, i32
  }
}

</mosaic_0001>

<llo_original>
// kernel: tpu_custom_call.1
$region0: #{tpu_custom_call.1}
  #allocation0 [shape = 'u32[]', space=smem, size = 0x4, offset = 0x4, fixed_abs, tag = 'smem constant byte address 0x4 - core index']
  #allocation1 [shape = 'u32[144,128]{1,0:T(1,128)}', space=vmem, size = 0x12000, scoped, tag = 'internal scratch']
  %s0 = inlined_call_operand.hbm [shape: f32[4,8,2048], index: 0, kind: input, shape index: {}]
  %s1 = inlined_call_operand.hbm [shape: f32[8,2048], index: 1, kind: input, shape index: {}]
  %s2 = inlined_call_operand.hbm [shape: f32[1,1,128], index: 2, kind: output, shape index: {}]
  %s3 = sld [smem:[#allocation0]]
  $region26: #{tpu_custom_call.1} parent=0
    _
  %s5 = ssub.s32 1, %s3
  %s6 = scalar_select 0, %s5, %s3
  $region1: #{tpu_custom_call.1} parent=0
    #allocation2 [shape = 'u8[196608]{0}', space=vmem, size = 0x30000, scoped, tag = 'input window, operand 0, single buffered']
    #allocation3 [shape = 's32[1]{0}', space=sflag, size = 0x4, scoped, tag = 'scoped memory for tpu_custom_call.1']
    #allocation4 [shape = 's32[1]{0}', space=sflag, size = 0x4, scoped, tag = 'scoped memory for tpu_custom_call.1']
    #allocation5 [shape = 'u8[65536]{0}', space=vmem, size = 0x10000, scoped, tag = 'input window, operand 1, single buffered']
    #allocation6 [shape = 's32[1]{0}', space=sflag, size = 0x4, scoped, tag = 'scoped memory for tpu_custom_call.1']
    #allocation7 [shape = 'u8[512]{0}', space=vmem, size = 0x400, scoped, tag = 'output window, operand 0, single buffered']
    %7 = vsyncpa [#allocation3], 0
    %8 = vsyncpa [#allocation6], 0
    %9 = vsyncpa [#allocation4], 0
    // Predicated region
    $region2: #{tpu_custom_call.1} parent=1 // pred_check
      _
    $region3: #{tpu_custom_call.1} parent=1 // pred_check_branch
      %11 = sbr.rel (0) target = $region5
    $region4: #{tpu_custom_call.1} parent=1 // pred_region
      %s13 = ssub.s32 6144, 6144
      %14 = vsyncadd [#allocation3], %s13
      %s15 = sshll.u32 [#allocation2], 4
      %s16 = int_to_ptr.vmem [resolvable:$true] %s15
      %21 = dma.hbm_to_vmem [thread:$0]  %s0, 6144, %s16, [#allocation3], 2048, 2048, 128
    $region5: #{tpu_custom_call.1} parent=1 // pred_fallthru
      _
    // Predicated region
    $region6: #{tpu_custom_call.1} parent=1 // pred_check
      _
    $region7: #{tpu_custom_call.1} parent=1 // pred_check_branch
      %23 = sbr.rel (0) target = $region9
    $region8: #{tpu_custom_call.1} parent=1 // pred_region
      %s25 = ssub.s32 2048, 2048
      %26 = vsyncadd [#allocation6], %s25
      %s28 = sshll.u32 [#allocation5], 4
      %s29 = int_to_ptr.vmem [resolvable:$true] %s28
      %31 = dma.hbm_to_vmem [thread:$0]  %s1, 2048, %s29, [#allocation6]
    $region9: #{tpu_custom_call.1} parent=1 // pred_fallthru
      _
    // Predicated region
    $region10: #{tpu_custom_call.1} parent=1 // pred_check
      _
    $region11: #{tpu_custom_call.1} parent=1 // pred_check_branch
      %33 = sbr.rel (0) target = $region13
    $region12: #{tpu_custom_call.1} parent=1 // pred_region
      %34 = dma.done [#allocation3], 6144
    $region13: #{tpu_custom_call.1} parent=1 // pred_fallthru
      _
    // Predicated region
    $region14: #{tpu_custom_call.1} parent=1 // pred_check
      _
    $region15: #{tpu_custom_call.1} parent=1 // pred_check_branch
      %36 = sbr.rel (0) target = $region17
    $region16: #{tpu_custom_call.1} parent=1 // pred_region
      %37 = dma.done [#allocation6], 2048
    $region17: #{tpu_custom_call.1} parent=1 // pred_fallthru
      _
    %v38 = vld [vmem:[#allocation5] sm:$0xff]
    %v39 = vld [vmem:[#allocation5 + $0x8] sm:$0xff]
    %v40 = vld [vmem:[#allocation5 + $0x10] sm:$0xff]
    %v41 = vld [vmem:[#allocation5 + $0x18] sm:$0xff]
    %v42 = vld [vmem:[#allocation5 + $0x20] sm:$0xff]
    %v43 = vld [vmem:[#allocation5 + $0x28] sm:$0xff]
    %v44 = vld [vmem:[#allocation5 + $0x30] sm:$0xff]
    %v45 = vld [vmem:[#allocation5 + $0x38] sm:$0xff]
    %v46 = vld [vmem:[#allocation5 + $0x40] sm:$0xff]
    %v47 = vld [vmem:[#allocation5 + $0x48] sm:$0xff]
    %v48 = vld [vmem:[#allocation5 + $0x50] sm:$0xff]
    %v49 = vld [vmem:[#allocation5 + $0x58] sm:$0xff]
    %v50 = vld [vmem:[#allocation5 + $0x60] sm:$0xff]
    %v51 = vld [vmem:[#allocation5 + $0x68] sm:$0xff]
    %v52 = vld [vmem:[#allocation5 + $0x70] sm:$0xff]
    %v53 = vld [vmem:[#allocation5 + $0x78] sm:$0xff]
    %v54 = vlaneseq
    %v55 = vand.u32 %v54, 127
    %vm56 = vcmp.lt.f32.partialorder %v38, 0.3
    %vm57 = vcmp.lt.f32.partialorder %v39, 0.3
    %vm58 = vcmp.lt.f32.partialorder %v40, 0.3
    %vm59 = vcmp.lt.f32.partialorder %v41, 0.3
    %vm60 = vcmp.lt.f32.partialorder %v42, 0.3
    %vm61 = vcmp.lt.f32.partialorder %v43, 0.3
    %vm62 = vcmp.lt.f32.partialorder %v44, 0.3
    %vm63 = vcmp.lt.f32.partialorder %v45, 0.3
    %vm64 = vcmp.lt.f32.partialorder %v46, 0.3
    %vm65 = vcmp.lt.f32.partialorder %v47, 0.3
    %vm66 = vcmp.lt.f32.partialorder %v48, 0.3
    %vm67 = vcmp.lt.f32.partialorder %v49, 0.3
    %vm68 = vcmp.lt.f32.partialorder %v50, 0.3
    %vm69 = vcmp.lt.f32.partialorder %v51, 0.3
    %vm70 = vcmp.lt.f32.partialorder %v52, 0.3
    %vm71 = vcmp.lt.f32.partialorder %v53, 0.3
    %vm72 = vcmp.gt.f32.partialorder %v38, 0.8
    %vm73 = vcmp.gt.f32.partialorder %v39, 0.8
    %vm74 = vcmp.gt.f32.partialorder %v40, 0.8
    %vm75 = vcmp.gt.f32.partialorder %v41, 0.8
    %vm76 = vcmp.gt.f32.partialorder %v42, 0.8
    %vm77 = vcmp.gt.f32.partialorder %v43, 0.8
    %vm78 = vcmp.gt.f32.partialorder %v44, 0.8
    %vm79 = vcmp.gt.f32.partialorder %v45, 0.8
    %vm80 = vcmp.gt.f32.partialorder %v46, 0.8
    %vm81 = vcmp.gt.f32.partialorder %v47, 0.8
    %vm82 = vcmp.gt.f32.partialorder %v48, 0.8
    %vm83 = vcmp.gt.f32.partialorder %v49, 0.8
    %vm84 = vcmp.gt.f32.partialorder %v50, 0.8
    %vm85 = vcmp.gt.f32.partialorder %v51, 0.8
    %vm86 = vcmp.gt.f32.partialorder %v52, 0.8
    %vm87 = vcmp.gt.f32.partialorder %v53, 0.8
    %vm88 = vmor %vm56, %vm72
    %vm89 = vmor %vm57, %vm73
    %vm90 = vmor %vm58, %vm74
    %vm91 = vmor %vm59, %vm75
    %vm92 = vmor %vm60, %vm76
    %vm93 = vmor %vm61, %vm77
    %vm94 = vmor %vm62, %vm78
    %vm95 = vmor %vm63, %vm79
    %vm96 = vmor %vm64, %vm80
    %vm97 = vmor %vm65, %vm81
    %vm98 = vmor %vm66, %vm82
    %vm99 = vmor %vm67, %vm83
    %vm100 = vmor %vm68, %vm84
    %vm101 = vmor %vm69, %vm85
    %vm102 = vmor %vm70, %vm86
    %vm103 = vmor %vm71, %vm87
    %v104 = vld [vmem:[#allocation2] sm:$0xff]
    %v105 = vld [vmem:[#allocation2 + $0x8] sm:$0xff]
    %v106 = vld [vmem:[#allocation2 + $0x10] sm:$0xff]
    %v107 = vld [vmem:[#allocation2 + $0x18] sm:$0xff]
    %v108 = vld [vmem:[#allocation2 + $0x20] sm:$0xff]
    %v109 = vld [vmem:[#allocation2 + $0x28] sm:$0xff]
    %v110 = vld [vmem:[#allocation2 + $0x30] sm:$0xff]
    %v111 = vld [vmem:[#allocation2 + $0x38] sm:$0xff]
    %v112 = vld [vmem:[#allocation2 + $0x40] sm:$0xff]
    %v113 = vld [vmem:[#allocation2 + $0x48] sm:$0xff]
    %v114 = vld [vmem:[#allocation2 + $0x50] sm:$0xff]
    %v115 = vld [vmem:[#allocation2 + $0x58] sm:$0xff]
    %v116 = vld [vmem:[#allocation2 + $0x60] sm:$0xff]
    %v117 = vld [vmem:[#allocation2 + $0x68] sm:$0xff]
    %v118 = vld [vmem:[#allocation2 + $0x70] sm:$0xff]
    %v119 = vld [vmem:[#allocation2 + $0x78] sm:$0xff]
    %s120 = scalar_lea.vmem [#allocation2], 128
    %v121 = vld [vmem:[%s120] sm:$0xff]
    %v122 = vld [vmem:[%s120 + $0x8] sm:$0xff]
    %v123 = vld [vmem:[%s120 + $0x10] sm:$0xff]
    %v124 = vld [vmem:[%s120 + $0x18] sm:$0xff]
    %v125 = vld [vmem:[%s120 + $0x20] sm:$0xff]
    %v126 = vld [vmem:[%s120 + $0x28] sm:$0xff]
    %v127 = vld [vmem:[%s120 + $0x30] sm:$0xff]
    %v128 = vld [vmem:[%s120 + $0x38] sm:$0xff]
    %v129 = vld [vmem:[%s120 + $0x40] sm:$0xff]
    %v130 = vld [vmem:[%s120 + $0x48] sm:$0xff]
    %v131 = vld [vmem:[%s120 + $0x50] sm:$0xff]
    %v132 = vld [vmem:[%s120 + $0x58] sm:$0xff]
    %v133 = vld [vmem:[%s120 + $0x60] sm:$0xff]
    %v134 = vld [vmem:[%s120 + $0x68] sm:$0xff]
    %v135 = vld [vmem:[%s120 + $0x70] sm:$0xff]
    %v136 = vld [vmem:[%s120 + $0x78] sm:$0xff]
    %v137 = vsub.f32 %v104, %v121
    %v138 = vsub.f32 %v105, %v122
    %v139 = vsub.f32 %v106, %v123
    %v140 = vsub.f32 %v107, %v124
    %v141 = vsub.f32 %v108, %v125
    %v142 = vsub.f32 %v109, %v126
    %v143 = vsub.f32 %v110, %v127
    %v144 = vsub.f32 %v111, %v128
    %v145 = vsub.f32 %v112, %v129
    %v146 = vsub.f32 %v113, %v130
    %v147 = vsub.f32 %v114, %v131
    %v148 = vsub.f32 %v115, %v132
    %v149 = vsub.f32 %v116, %v133
    %v150 = vsub.f32 %v117, %v134
    %v151 = vsub.f32 %v118, %v135
    %v152 = vsub.f32 %v119, %v136
    %v153 = vmul.f32 %v137, %v137
    %v154 = vmul.f32 %v138, %v138
    %v155 = vmul.f32 %v139, %v139
    %v156 = vmul.f32 %v140, %v140
    %v157 = vmul.f32 %v141, %v141
    %v158 = vmul.f32 %v142, %v142
    %v159 = vmul.f32 %v143, %v143
    %v160 = vmul.f32 %v144, %v144
    %v161 = vmul.f32 %v145, %v145
    %v162 = vmul.f32 %v146, %v146
    %v163 = vmul.f32 %v147, %v147
    %v164 = vmul.f32 %v148, %v148
    %v165 = vmul.f32 %v149, %v149
    %v166 = vmul.f32 %v150, %v150
    %v167 = vmul.f32 %v151, %v151
    %v168 = vmul.f32 %v152, %v152
    %v169 = vsel %vm88, %v153, 0.0
    %v170 = vsel %vm89, %v154, 0.0
    %v171 = vsel %vm90, %v155, 0.0
    %v172 = vsel %vm91, %v156, 0.0
    %v173 = vsel %vm92, %v157, 0.0
    %v174 = vsel %vm93, %v158, 0.0
    %v175 = vsel %vm94, %v159, 0.0
    %v176 = vsel %vm95, %v160, 0.0
    %v177 = vsel %vm96, %v161, 0.0
    %v178 = vsel %vm97, %v162, 0.0
    %v179 = vsel %vm98, %v163, 0.0
    %v180 = vsel %vm99, %v164, 0.0
    %v181 = vsel %vm100, %v165, 0.0
    %v182 = vsel %vm101, %v166, 0.0
    %v183 = vsel %vm102, %v167, 0.0
    %v184 = vsel %vm103, %v168, 0.0
    %v185 = vadd.f32 %v169, %v170
    %v186 = vadd.f32 %v185, %v171
    %v187 = vadd.f32 %v186, %v172
    %v188 = vadd.f32 %v187, %v173
    %v189 = vadd.f32 %v188, %v174
    %v190 = vadd.f32 %v189, %v175
    %v191 = vadd.f32 %v190, %v176
    %v192 = vadd.f32 %v191, %v177
    %v193 = vadd.f32 %v192, %v178
    %v194 = vadd.f32 %v193, %v179
    %v195 = vadd.f32 %v194, %v180
    %v196 = vadd.f32 %v195, %v181
    %v197 = vadd.f32 %v196, %v182
    %v198 = vadd.f32 %v197, %v183
    %v199 = vadd.f32 %v198, %v184
    %200 = vadd.xlane.f32.xlu0 %v199
    %v201 = vpop.xlane.xlu0 %200
    %v202 = vrot.slane %v201, 4
    %v203 = vadd.f32 %v201, %v202
    %v204 = vrot.slane %v203, 2
    %v205 = vadd.f32 %v203, %v204
    %v206 = vrot.slane %v205, 1
    %v207 = vadd.f32 %v205, %v206
    %s208 = vtos %v207
    %v209 = vsel %vm88, 1, 0
    %v210 = vsel %vm89, 1, 0
    %v211 = vsel %vm90, 1, 0
    %v212 = vsel %vm91, 1, 0
    %v213 = vsel %vm92, 1, 0
    %v214 = vsel %vm93, 1, 0
    %v215 = vsel %vm94, 1, 0
    %v216 = vsel %vm95, 1, 0
    %v217 = vsel %vm96, 1, 0
    %v218 = vsel %vm97, 1, 0
    %v219 = vsel %vm98, 1, 0
    %v220 = vsel %vm99, 1, 0
    %v221 = vsel %vm100, 1, 0
    %v222 = vsel %vm101, 1, 0
    %v223 = vsel %vm102, 1, 0
    %v224 = vsel %vm103, 1, 0
    %v225 = vcvt.s32.f32 %v209
    %v226 = vcvt.s32.f32 %v210
    %v227 = vcvt.s32.f32 %v211
    %v228 = vcvt.s32.f32 %v212
    %v229 = vcvt.s32.f32 %v213
    %v230 = vcvt.s32.f32 %v214
    %v231 = vcvt.s32.f32 %v215
    %v232 = vcvt.s32.f32 %v216
    %v233 = vcvt.s32.f32 %v217
    %v234 = vcvt.s32.f32 %v218
    %v235 = vcvt.s32.f32 %v219
    %v236 = vcvt.s32.f32 %v220
    %v237 = vcvt.s32.f32 %v221
    %v238 = vcvt.s32.f32 %v222
    %v239 = vcvt.s32.f32 %v223
    %v240 = vcvt.s32.f32 %v224
    %v241 = vadd.f32 %v225, %v226
    %v242 = vadd.f32 %v241, %v227
    %v243 = vadd.f32 %v242, %v228
    %v244 = vadd.f32 %v243, %v229
    %v245 = vadd.f32 %v244, %v230
    %v246 = vadd.f32 %v245, %v231
    %v247 = vadd.f32 %v246, %v232
    %v248 = vadd.f32 %v247, %v233
    %v249 = vadd.f32 %v248, %v234
    %v250 = vadd.f32 %v249, %v235
    %v251 = vadd.f32 %v250, %v236
    %v252 = vadd.f32 %v251, %v237
    %v253 = vadd.f32 %v252, %v238
    %v254 = vadd.f32 %v253, %v239
    %v255 = vadd.f32 %v254, %v240
    %256 = vadd.xlane.f32.xlu0 %v255
    %v257 = vpop.xlane.xlu0 %256
    %v258 = vrot.slane %v257, 4
    %v259 = vadd.f32 %v257, %v258
    %v260 = vrot.slane %v259, 2
    %v261 = vadd.f32 %v259, %v260
    %v262 = vrot.slane %v261, 1
    %v263 = vadd.f32 %v261, %v262
    %s264 = vtos %v263
    %vm265 = vcmp.eq.s32.totalorder %v55, 0
    %v266 = vstv %s208
    %v267 = vsel %vm265, %v266, 0.0
    %vm268 = vcmp.eq.s32.totalorder %v55, 2
    %v269 = vstv %s264
    %v270 = vsel %vm268, %v269, %v267
    %vm271 = vcmp.lt.f32.partialorder %v38, 0.6
    %vm272 = vcmp.lt.f32.partialorder %v39, 0.6
    %vm273 = vcmp.lt.f32.partialorder %v40, 0.6
    %vm274 = vcmp.lt.f32.partialorder %v41, 0.6
    %vm275 = vcmp.lt.f32.partialorder %v42, 0.6
    %vm276 = vcmp.lt.f32.partialorder %v43, 0.6
    %vm277 = vcmp.lt.f32.partialorder %v44, 0.6
    %vm278 = vcmp.lt.f32.partialorder %v45, 0.6
    %vm279 = vcmp.lt.f32.partialorder %v46, 0.6
    %vm280 = vcmp.lt.f32.partialorder %v47, 0.6
    %vm281 = vcmp.lt.f32.partialorder %v48, 0.6
    %vm282 = vcmp.lt.f32.partialorder %v49, 0.6
    %vm283 = vcmp.lt.f32.partialorder %v50, 0.6
    %vm284 = vcmp.lt.f32.partialorder %v51, 0.6
    %vm285 = vcmp.lt.f32.partialorder %v52, 0.6
    %vm286 = vcmp.lt.f32.partialorder %v53, 0.6
    %vm287 = vcmp.gt.f32.partialorder %v38, 1.2
    %vm288 = vcmp.gt.f32.partialorder %v39, 1.2
    %vm289 = vcmp.gt.f32.partialorder %v40, 1.2
    %vm290 = vcmp.gt.f32.partialorder %v41, 1.2
    %vm291 = vcmp.gt.f32.partialorder %v42, 1.2
    %vm292 = vcmp.gt.f32.partialorder %v43, 1.2
    %vm293 = vcmp.gt.f32.partialorder %v44, 1.2
    %vm294 = vcmp.gt.f32.partialorder %v45, 1.2
    %vm295 = vcmp.gt.f32.partialorder %v46, 1.2
    %vm296 = vcmp.gt.f32.partialorder %v47, 1.2
    %vm297 = vcmp.gt.f32.partialorder %v48, 1.2
    %vm298 = vcmp.gt.f32.partialorder %v49, 1.2
    %vm299 = vcmp.gt.f32.partialorder %v50, 1.2
    %vm300 = vcmp.gt.f32.partialorder %v51, 1.2
    %vm301 = vcmp.gt.f32.partialorder %v52, 1.2
    %vm302 = vcmp.gt.f32.partialorder %v53, 1.2
    %vm303 = vmor %vm271, %vm287
    %vm304 = vmor %vm272, %vm288
    %vm305 = vmor %vm273, %vm289
    %vm306 = vmor %vm274, %vm290
    %vm307 = vmor %vm275, %vm291
    %vm308 = vmor %vm276, %vm292
    %vm309 = vmor %vm277, %vm293
    %vm310 = vmor %vm278, %vm294
    %vm311 = vmor %vm279, %vm295
    %vm312 = vmor %vm280, %vm296
    %vm313 = vmor %vm281, %vm297
    %vm314 = vmor %vm282, %vm298
    %vm315 = vmor %vm283, %vm299
    %vm316 = vmor %vm284, %vm300
    %vm317 = vmor %vm285, %vm301
    %vm318 = vmor %vm286, %vm302
    %s319 = scalar_lea.vmem [#allocation2], 256
    %v320 = vld [vmem:[%s319] sm:$0xff]
    %v321 = vld [vmem:[%s319 + $0x8] sm:$0xff]
    %v322 = vld [vmem:[%s319 + $0x10] sm:$0xff]
    %v323 = vld [vmem:[%s319 + $0x18] sm:$0xff]
    %v324 = vld [vmem:[%s319 + $0x20] sm:$0xff]
    %v325 = vld [vmem:[%s319 + $0x28] sm:$0xff]
    %v326 = vld [vmem:[%s319 + $0x30] sm:$0xff]
    %v327 = vld [vmem:[%s319 + $0x38] sm:$0xff]
    %v328 = vld [vmem:[%s319 + $0x40] sm:$0xff]
    %v329 = vld [vmem:[%s319 + $0x48] sm:$0xff]
    %v330 = vld [vmem:[%s319 + $0x50] sm:$0xff]
    %v331 = vld [vmem:[%s319 + $0x58] sm:$0xff]
    %v332 = vld [vmem:[%s319 + $0x60] sm:$0xff]
    %v333 = vld [vmem:[%s319 + $0x68] sm:$0xff]
    %v334 = vld [vmem:[%s319 + $0x70] sm:$0xff]
    %v335 = vld [vmem:[%s319 + $0x78] sm:$0xff]
    %v336 = vsub.f32 %v121, %v320
    %v337 = vsub.f32 %v122, %v321
    %v338 = vsub.f32 %v123, %v322
    %v339 = vsub.f32 %v124, %v323
    %v340 = vsub.f32 %v125, %v324
    %v341 = vsub.f32 %v126, %v325
    %v342 = vsub.f32 %v127, %v326
    %v343 = vsub.f32 %v128, %v327
    %v344 = vsub.f32 %v129, %v328
    %v345 = vsub.f32 %v130, %v329
    %v346 = vsub.f32 %v131, %v330
    %v347 = vsub.f32 %v132, %v331
    %v348 = vsub.f32 %v133, %v332
    %v349 = vsub.f32 %v134, %v333
    %v350 = vsub.f32 %v135, %v334
    %v351 = vsub.f32 %v136, %v335
    %v352 = vmul.f32 %v336, %v336
    %v353 = vmul.f32 %v337, %v337
    %v354 = vmul.f32 %v338, %v338
    %v355 = vmul.f32 %v339, %v339
    %v356 = vmul.f32 %v340, %v340
    %v357 = vmul.f32 %v341, %v341
    %v358 = vmul.f32 %v342, %v342
    %v359 = vmul.f32 %v343, %v343
    %v360 = vmul.f32 %v344, %v344
    %v361 = vmul.f32 %v345, %v345
    %v362 = vmul.f32 %v346, %v346
    %v363 = vmul.f32 %v347, %v347
    %v364 = vmul.f32 %v348, %v348
    %v365 = vmul.f32 %v349, %v349
    %v366 = vmul.f32 %v350, %v350
    %v367 = vmul.f32 %v351, %v351
    %v368 = vsel %vm303, %v352, 0.0
    %v369 = vsel %vm304, %v353, 0.0
    %v370 = vsel %vm305, %v354, 0.0
    %v371 = vsel %vm306, %v355, 0.0
    %v372 = vsel %vm307, %v356, 0.0
    %v373 = vsel %vm308, %v357, 0.0
    %v374 = vsel %vm309, %v358, 0.0
    %v375 = vsel %vm310, %v359, 0.0
    %v376 = vsel %vm311, %v360, 0.0
    %v377 = vsel %vm312, %v361, 0.0
    %v378 = vsel %vm313, %v362, 0.0
    %v379 = vsel %vm314, %v363, 0.0
    %v380 = vsel %vm315, %v364, 0.0
    %v381 = vsel %vm316, %v365, 0.0
    %v382 = vsel %vm317, %v366, 0.0
    %v383 = vsel %vm318, %v367, 0.0
    %v384 = vadd.f32 %v368, %v369
    %v385 = vadd.f32 %v384, %v370
    %v386 = vadd.f32 %v385, %v371
    %v387 = vadd.f32 %v386, %v372
    %v388 = vadd.f32 %v387, %v373
    %v389 = vadd.f32 %v388, %v374
    %v390 = vadd.f32 %v389, %v375
    %v391 = vadd.f32 %v390, %v376
    %v392 = vadd.f32 %v391, %v377
    %v393 = vadd.f32 %v392, %v378
    %v394 = vadd.f32 %v393, %v379
    %v395 = vadd.f32 %v394, %v380
    %v396 = vadd.f32 %v395, %v381
    %v397 = vadd.f32 %v396, %v382
    %v398 = vadd.f32 %v397, %v383
    %399 = vadd.xlane.f32.xlu0 %v398
    %v400 = vpop.xlane.xlu0 %399
    %v401 = vrot.slane %v400, 4
    %v402 = vadd.f32 %v400, %v401
    %v403 = vrot.slane %v402, 2
    %v404 = vadd.f32 %v402, %v403
    %v405 = vrot.slane %v404, 1
    %v406 = vadd.f32 %v404, %v405
    %s407 = vtos %v406
    %v408 = vsel %vm303, 1, 0
    %v409 = vsel %vm304, 1, 0
    %v410 = vsel %vm305, 1, 0
    %v411 = vsel %vm306, 1, 0
    %v412 = vsel %vm307, 1, 0
    %v413 = vsel %vm308, 1, 0
    %v414 = vsel %vm309, 1, 0
    %v415 = vsel %vm310, 1, 0
    %v416 = vsel %vm311, 1, 0
    %v417 = vsel %vm312, 1, 0
    %v418 = vsel %vm313, 1, 0
    %v419 = vsel %vm314, 1, 0
    %v420 = vsel %vm315, 1, 0
    %v421 = vsel %vm316, 1, 0
    %v422 = vsel %vm317, 1, 0
    %v423 = vsel %vm318, 1, 0
    %v424 = vcvt.s32.f32 %v408
    %v425 = vcvt.s32.f32 %v409
    %v426 = vcvt.s32.f32 %v410
    %v427 = vcvt.s32.f32 %v411
    %v428 = vcvt.s32.f32 %v412
    %v429 = vcvt.s32.f32 %v413
    %v430 = vcvt.s32.f32 %v414
    %v431 = vcvt.s32.f32 %v415
    %v432 = vcvt.s32.f32 %v416
    %v433 = vcvt.s32.f32 %v417
    %v434 = vcvt.s32.f32 %v418
    %v435 = vcvt.s32.f32 %v419
    %v436 = vcvt.s32.f32 %v420
    %v437 = vcvt.s32.f32 %v421
    %v438 = vcvt.s32.f32 %v422
    %v439 = vcvt.s32.f32 %v423
    %v440 = vadd.f32 %v424, %v425
    %v441 = vadd.f32 %v440, %v426
    %v442 = vadd.f32 %v441, %v427
    %v443 = vadd.f32 %v442, %v428
    %v444 = vadd.f32 %v443, %v429
    %v445 = vadd.f32 %v444, %v430
    %v446 = vadd.f32 %v445, %v431
    %v447 = vadd.f32 %v446, %v432
    %v448 = vadd.f32 %v447, %v433
    %v449 = vadd.f32 %v448, %v434
    %v450 = vadd.f32 %v449, %v435
    %v451 = vadd.f32 %v450, %v436
    %v452 = vadd.f32 %v451, %v437
    %v453 = vadd.f32 %v452, %v438
    %v454 = vadd.f32 %v453, %v439
    %455 = vadd.xlane.f32.xlu0 %v454
    %v456 = vpop.xlane.xlu0 %455
    %v457 = vrot.slane %v456, 4
    %v458 = vadd.f32 %v456, %v457
    %v459 = vrot.slane %v458, 2
    %v460 = vadd.f32 %v458, %v459
    %v461 = vrot.slane %v460, 1
    %v462 = vadd.f32 %v460, %v461
    %s463 = vtos %v462
    %vm464 = vcmp.eq.s32.totalorder %v55, 1
    %v465 = vstv %s407
    %v466 = vsel %vm464, %v465, %v270
    %vm467 = vcmp.eq.s32.totalorder %v55, 3
    %v468 = vstv %s463
    %v469 = vsel %vm467, %v468, %v466
    %470 = vst [vmem:[#allocation7] sm:$0x1] %v469
    // Predicated region
    $region18: #{tpu_custom_call.1} parent=1 // pred_check
      _
    $region19: #{tpu_custom_call.1} parent=1 // pred_check_branch
      %472 = sbr.rel (0) target = $region21
    $region20: #{tpu_custom_call.1} parent=1 // pred_region
      %s474 = ssub.s32 16, 16
      %475 = vsyncadd [#allocation4], %s474
      %s477 = sshll.u32 [#allocation7], 4
      %s478 = int_to_ptr.vmem [resolvable:$true] %s477
      %480 = dma.vmem_to_hbm [thread:$0]  %s478, 16, %s2, [#allocation4]
    $region21: #{tpu_custom_call.1} parent=1 // pred_fallthru
      _
    // Predicated region
    $region22: #{tpu_custom_call.1} parent=1 // pred_check
      _
    $region23: #{tpu_custom_call.1} parent=1 // pred_check_branch
      %482 = sbr.rel (0) target = $region25
    $region24: #{tpu_custom_call.1} parent=1 // pred_region
      %483 = dma.done [#allocation4], 16
    $region25: #{tpu_custom_call.1} parent=1 // pred_fallthru
      _
    %484 = vsyncpa [#allocation3], 1
    %485 = vsyncpa [#allocation6], 1
    %486 = vsyncpa [#allocation4], 1

</llo_original>
